<compile_context>
chip_gen: v7x
topology: tpu7x:2x2x1
jax: 0.10.0
libtpu: 0.0.40
codegen_flags: <defaults>
</compile_context>

<pallas_src>
import functools

import jax
import jax.numpy as jnp
from jax.experimental import pallas as pl
from jax.experimental.pallas import tpu as pltpu


def _maxpool_kernel(x_ref, o_ref, *scratch, ks, stride, padding, Ho, Wo, fill):
    # x_ref block: (B, H, W) -- W on the lane axis, H on sublanes, B (pooling planes) leading.
    B, H, W = x_ref.shape
    Hp, Wp = H + 2 * padding, W + 2 * padding

    if padding > 0:
        pad_ref = scratch[0]
        # Halo-only fill (corners covered twice by the column strips; harmless).
        row_fill = jnp.full((B, padding, Wp), fill, dtype=pad_ref.dtype)
        col_fill = jnp.full((B, Hp, padding), fill, dtype=pad_ref.dtype)
        pad_ref[:, 0:padding, :] = row_fill
        pad_ref[:, padding + H:Hp, :] = row_fill
        pad_ref[:, :, 0:padding] = col_fill
        pad_ref[:, :, padding + W:Wp] = col_fill
        pad_ref[:, padding:padding + H, padding:padding + W] = x_ref[...]
        src = pad_ref
    else:
        src = x_ref

    if stride == 1:
        # Separable running max in the native dtype.
        rmax = src[:, :, 0:Wo]                      # W-pass: lane-axis shifts
        for dj in range(1, ks):
            rmax = jnp.maximum(rmax, src[:, :, dj:dj + Wo])
        out = rmax[:, 0:Ho, :]                      # H-pass: sublane-axis shifts
        for di in range(1, ks):
            out = jnp.maximum(out, rmax[:, di:di + Ho, :])
    else:
        # stride > 1: read only the output-sampled grid (strided VMEM loads); ks*ks maxima is
        # still trivial VPU work for an HBM-bound kernel and temporaries stay output-sized.
        out = src[:, pl.ds(0, Ho, stride), pl.ds(0, Wo, stride)]
        for di in range(ks):
            for dj in range(ks):
                if di == 0 and dj == 0:
                    continue
                out = jnp.maximum(
                    out, src[:, pl.ds(di, Ho, stride), pl.ds(dj, Wo, stride)])

    o_ref[...] = out


def _tpu_vmem_and_cores():
    """Best-effort query of VMEM capacity and TensorCore count (safe fallbacks)."""
    vmem_cap = 64 << 20     # conservative fallback: v7x physical VMEM per TensorCore
    cores = 2               # assume dual-TC unless we learn otherwise (cheap if wrong)
    try:
        info = pltpu.get_tpu_info()
        for name in ("vmem_capacity_bytes", "vmem_size_bytes", "vmem_bytes"):
            v = getattr(info, name, None)
            if v is None:
                continue
            try:
                v = int(v)
            except Exception:
                continue
            if v > 0:
                vmem_cap = v
                break
        for name in ("num_cores", "core_count", "tensorcore_count", "num_tensorcores"):
            c = getattr(info, name, None)
            if c is None:
                continue
            try:
                c = int(c)
            except Exception:
                continue
            if c > 0:
                cores = c
                break
    except Exception:
        pass
    return vmem_cap, cores


def qmaxpool2d(x, kernel_size=3, stride=1, padding=0):
    """Pallas TPU equivalent of F.max_pool2d(x, kernel_size, stride, padding); x is NCHW."""
    N, C, H, W = x.shape
    ks, st, pad = int(kernel_size), int(stride), int(padding)
    assert ks >= 1 and st >= 1 and pad >= 0
    assert pad <= ks // 2, "F.max_pool2d requires padding <= kernel_size // 2"
    Hp, Wp = H + 2 * pad, W + 2 * pad
    assert Hp >= ks and Wp >= ks, "pooling window larger than (padded) input"
    Ho = (Hp - ks) // st + 1
    Wo = (Wp - ks) // st + 1

    dtype = x.dtype
    if jnp.issubdtype(dtype, jnp.floating):
        fill = float("-inf")                 # padded values never win the max
    else:
        fill = int(jnp.iinfo(dtype).min)     # integer-safe padding identity

    # Fold (N, C) into independent pooling planes: metadata-only reshape (contiguous leading
    # dims), no HBM traffic; W lands on the 128-lane axis.  (For C >= 128 an end-to-end NHWC
    # pipeline would keep C on lanes, but the module contract here is NCHW.)
    NC = N * C
    x_planes = x.reshape(NC, H, W)

    # --- block sizing --------------------------------------------------------------------
    itemsize = jnp.dtype(dtype).itemsize
    in_plane = H * W * itemsize
    out_plane = Ho * Wo * itemsize
    pad_plane = Hp * Wp * itemsize if pad > 0 else 0
    tmp_plane = (Hp * (Wp - ks + 1) + 2 * Ho * Wo) * itemsize   # rmax + out temporaries
    per_plane = 2 * (in_plane + out_plane) + pad_plane + tmp_plane

    vmem_cap, cores = _tpu_vmem_and_cores()
    vmem_limit = max(32 << 20, min((vmem_cap * 3) // 4, 96 << 20))
    budget = min(vmem_limit // 2, 48 << 20)

    BNC = max(1, min(NC, budget // max(per_plane, 1)))
    # Enough grid steps to feed both TensorCores on dual-TC chips and keep input-DMA /
    # output-writeback overlap -- but never shrink blocks below ~512 KiB unless the whole
    # problem is tiny anyway (per-grid-step overhead ~0.35 us).
    min_steps = min(NC, 4 if cores >= 2 else 2)
    if pl.cdiv(NC, BNC) < min_steps:
        cand = max(1, pl.cdiv(NC, min_steps))
        if cand * per_plane >= (512 << 10) or NC * per_plane <= (4 << 20):
            BNC = min(BNC, cand)
    grid = (pl.cdiv(NC, BNC),)   # partial last block: OOB reads are don't-care, OOB writes dropped
    # TODO(synk): for very large planes (per_plane > budget, e.g. 224x224x256 activations) add an
    # H-tiled path with a (ks-1)-row halo instead of whole-plane blocks.

    scratch_shapes = []
    if pad > 0:
        scratch_shapes.append(pltpu.VMEM((BNC, Hp, Wp), dtype))

    kern = functools.partial(_maxpool_kernel, ks=ks, stride=st, padding=pad,
                             Ho=Ho, Wo=Wo, fill=fill)
    out_planes = pl.pallas_call(
        kern,
        out_shape=jax.ShapeDtypeStruct((NC, Ho, Wo), dtype),
        grid=grid,
        in_specs=[pl.BlockSpec((BNC, H, W), lambda i: (i, 0, 0))],
        out_specs=pl.BlockSpec((BNC, Ho, Wo), lambda i: (i, 0, 0)),
        scratch_shapes=scratch_shapes,
        compiler_params=pltpu.CompilerParams(
            dimension_semantics=("parallel",),
            vmem_limit_bytes=int(vmem_limit),
        ),
    )(x_planes)

    return out_planes.reshape(N, C, Ho, Wo)   # metadata-only reshape back to NCHW


if __name__ == "__main__":
    # QMaxPooling2d(quant_type='INT', kernel_size=3, stride=1, padding=0, qi=False)
    # -> forward(x) == F.max_pool2d(x, 3, 1, 0); no learnable parameters.
    key = jax.random.PRNGKey(0)
    x = jax.random.normal(key, (2, 4, 16, 16), dtype=jnp.float32)

    out = qmaxpool2d(x, kernel_size=3, stride=1, padding=0)
    out = jax.block_until_ready(out)

    # Reference check with lax.reduce_window (pure JAX, not part of the kernel).
    ref = jax.lax.reduce_window(
        x, -jnp.inf, jax.lax.max,
        window_dimensions=(1, 1, 3, 3),
        window_strides=(1, 1, 1, 1),
        padding="VALID",
    )
    assert out.shape == (2, 4, 14, 14), out.shape
    assert jnp.allclose(out, ref), "mismatch vs reference max pool"

    print("KERNEL_OK")
</pallas_src>

<mosaic_0001>
module attributes {stable_mosaic.version = 11 : i64} {
  func.func @_maxpool_kernel(%arg0: i32, %arg1: memref<2x16x16xf32, #tpu.memory_space<vmem>>, %arg2: memref<2x14x14xf32, #tpu.memory_space<vmem>>) attributes {dimension_semantics = [#tpu.dimension_semantics<parallel>], iteration_bounds = array<i64: 4>, scalar_prefetch = 0 : i64, scratch_operands = 0 : i64, tpu.core_type = #tpu.core_type<tc>, window_params = [{transform_indices = @transform_0, window_bounds = array<i64: 2, 16, 16>}, {transform_indices = @transform_1, window_bounds = array<i64: 2, 14, 14>}]} {
    %c0 = arith.constant 0 : index
    %c0_0 = arith.constant 0 : index
    %c0_1 = arith.constant 0 : index
    %0 = vector.load %arg1[%c0, %c0_0, %c0_1] : memref<2x16x16xf32, #tpu.memory_space<vmem>>, vector<2x16x14xf32>
    %c0_2 = arith.constant 0 : index
    %c0_3 = arith.constant 0 : index
    %c1 = arith.constant 1 : index
    %1 = vector.load %arg1[%c0_2, %c0_3, %c1] : memref<2x16x16xf32, #tpu.memory_space<vmem>>, vector<2x16x14xf32>
    %2 = arith.maximumf %0, %1 : vector<2x16x14xf32>
    %c0_4 = arith.constant 0 : index
    %c0_5 = arith.constant 0 : index
    %c2 = arith.constant 2 : index
    %3 = vector.load %arg1[%c0_4, %c0_5, %c2] : memref<2x16x16xf32, #tpu.memory_space<vmem>>, vector<2x16x14xf32>
    %4 = arith.maximumf %2, %3 : vector<2x16x14xf32>
    %5 = vector.extract_strided_slice %4 {offsets = [0, 0, 0], sizes = [2, 14, 14], strides = [1, 1, 1]} : vector<2x16x14xf32> to vector<2x14x14xf32>
    %6 = vector.extract_strided_slice %4 {offsets = [0, 1, 0], sizes = [2, 14, 14], strides = [1, 1, 1]} : vector<2x16x14xf32> to vector<2x14x14xf32>
    %7 = arith.maximumf %5, %6 : vector<2x14x14xf32>
    %8 = vector.extract_strided_slice %4 {offsets = [0, 2, 0], sizes = [2, 14, 14], strides = [1, 1, 1]} : vector<2x16x14xf32> to vector<2x14x14xf32>
    %9 = arith.maximumf %7, %8 : vector<2x14x14xf32>
    %c0_6 = arith.constant 0 : index
    %c0_7 = arith.constant 0 : index
    %c0_8 = arith.constant 0 : index
    %10 = vector.load %arg2[%c0_6, %c0_7, %c0_8] : memref<2x14x14xf32, #tpu.memory_space<vmem>>, vector<2x14x14xf32>
    tpu.vector_store %arg2[%c0_6, %c0_7, %c0_8], %9 {strides = array<i32>} : memref<2x14x14xf32, #tpu.memory_space<vmem>>, vector<2x14x14xf32>,
    return
  }
  func.func @transform_0(%arg0: i32) -> (i32, i32, i32) {
    %c0_i32 = arith.constant 0 : i32
    %c0_i32_0 = arith.constant 0 : i32
    %c0_i32_1 = arith.constant 0 : i32
    return %arg0, %c0_i32, %c0_i32_0 : i32, i32, i32
  }
  func.func @transform_1(%arg0: i32) -> (i32, i32, i32) {
    %c0_i32 = arith.constant 0 : i32
    %c0_i32_0 = arith.constant 0 : i32
    %c0_i32_1 = arith.constant 0 : i32
    return %arg0, %c0_i32, %c0_i32_0 : i32, i32, i32
  }
}

</mosaic_0001>

<llo_original>
// kernel: tpu_custom_call.1
$region0: #{tpu_custom_call.1}
  #allocation0 [shape = 'u32[]', space=smem, size = 0x4, offset = 0x4, fixed_abs, tag = 'smem constant byte address 0x4 - core index']
  #allocation1 [shape = 'u32[144,128]{1,0:T(1,128)}', space=vmem, size = 0x12000, scoped, tag = 'internal scratch']
  %s0 = inlined_call_operand.hbm [shape: f32[8,16,16], index: 0, kind: input, shape index: {}]
  %s1 = inlined_call_operand.vmem [shape: f32[8,14,14], index: 1, kind: output, shape index: {}]
  %s2 = sld [smem:[#allocation0]]
  $region41: #{tpu_custom_call.1} parent=0
    _
  %s4 = ssub.s32 1, %s2
  %s5 = scalar_select 0, %s4, %s2
  $region1: #{tpu_custom_call.1} parent=0
    #allocation2 [shape = 'u8[32768]{0}', space=vmem, size = 0x8000, scoped, tag = 'input window, operand 0']
    #allocation3 [shape = 's32[2]{0}', space=sflag, size = 0x8, scoped, tag = 'scoped memory for tpu_custom_call.1']
    %6 = vsyncpa [#allocation3], 0
    %s7 = scalar_lea.sflag [#allocation3], 1
    %8 = vsyncpa %s7, 0
    loop: start=0, step=1, limit=6
    $region2: #{tpu_custom_call.1} parent=1 // loop_pre_header
      _
    $region3: #{tpu_custom_call.1} parent=1 // loop_header
      %s10 = sphi 0, %s14
      %p11 = scmp.ge.s32.totalorder %s10, 6
      %s20 = sphi 0, %s22
      %s23 = sphi 0, %s20
      %s24 = sphi 0, %s23
      %s40 = sphi 0, %s24
      %s46 = sphi 0, %s48
      %s49 = sphi 0, %s46
      %s50 = sphi 0, %s49
      %s66 = sphi 0, %s50
    $region4: #{tpu_custom_call.1} parent=1 // loop_header_branch
      %13 = sbr.rel (%p11) target = $region8
    $region5: #{tpu_custom_call.1} parent=1 // loop_body
      %s15 = ssub.s32 %s10, 1
      %s16 = ssub.s32 %s10, 2
      %s17 = sadd.s32 %s10, 1
      %s18 = ssub.s32 %s10, %s17
      %p19 = scmp.eq.s32.totalorder %s18, 0
      %s21 = sadd.s32 %s20, 1
      %s22 = scalar_select %p19, %s20, %s21
      %p25 = pneg %p19
      %p26 = scmp.eq.s32.totalorder %s10, 3
      %p27 = por %p25, %p26
      %p28 = scmp.ne.s32.totalorder %s20, %s23
      %p29 = scmp.eq.s32.totalorder %s10, 0
      %p30 = por %p28, %p29
      %p31 = scmp.ne.s32.totalorder %s20, %s23
      %p32 = scmp.eq.s32.totalorder %s15, 3
      %p33 = por %p31, %p32
      %p34 = scmp.ne.s32.totalorder %s23, %s24
      %p35 = scmp.eq.s32.totalorder %s15, 0
      %p36 = por %p34, %p35
      %p37 = scmp.ne.s32.totalorder %s23, %s24
      %p38 = scmp.eq.s32.totalorder %s16, 3
      %p39 = por %p37, %p38
      %p41 = scmp.ne.s32.totalorder %s24, %s40
      %p42 = scmp.eq.s32.totalorder %s16, 0
      %p43 = por %p41, %p42
      %s44 = ssub.s32 %s10, %s17
      %p45 = scmp.eq.s32.totalorder %s44, 0
      %s47 = sadd.s32 %s46, 1
      %s48 = scalar_select %p45, %s46, %s47
      %p51 = pneg %p45
      %p52 = scmp.eq.s32.totalorder %s10, 3
      %p53 = por %p51, %p52
      %p54 = scmp.ne.s32.totalorder %s46, %s49
      %p55 = scmp.eq.s32.totalorder %s10, 0
      %p56 = por %p54, %p55
      %p57 = scmp.ne.s32.totalorder %s46, %s49
      %p58 = scmp.eq.s32.totalorder %s15, 3
      %p59 = por %p57, %p58
      %p60 = scmp.ne.s32.totalorder %s49, %s50
      %p61 = scmp.eq.s32.totalorder %s15, 0
      %p62 = por %p60, %p61
      %p63 = scmp.ne.s32.totalorder %s49, %s50
      %p64 = scmp.eq.s32.totalorder %s16, 3
      %p65 = por %p63, %p64
      %p67 = scmp.ne.s32.totalorder %s50, %s66
      %p68 = scmp.eq.s32.totalorder %s16, 0
      %p69 = por %p67, %p68
      %p70 = scmp.le.s32.totalorder 1, %s10
      %p71 = scmp.lt.s32.totalorder %s10, 5
      %p72 = pnand %p70, %p71
      %p73 = pneg %p72
      // Predicated region
      $region9: #{tpu_custom_call.1} parent=5 // pred_check
        _
      $region10: #{tpu_custom_call.1} parent=5 // pred_check_branch
        %75 = sbr.rel (%p72) target = $region12
      $region11: #{tpu_custom_call.1} parent=5 // pred_region
        %s76 = ssub.s32 %s10, 1
      $region12: #{tpu_custom_call.1} parent=5 // pred_fallthru
        _
      %p77 = scmp.lt.s32.totalorder %s10, 4
      // Predicated region
      $region13: #{tpu_custom_call.1} parent=5 // pred_check
        %p78 = pneg %p77
      $region14: #{tpu_custom_call.1} parent=5 // pred_check_branch
        %80 = sbr.rel (%p78) target = $region16
      $region15: #{tpu_custom_call.1} parent=5 // pred_region
        // Predicated region
        $region17: #{tpu_custom_call.1} parent=15 // pred_check
          %p81 = pneg %p30
        $region18: #{tpu_custom_call.1} parent=15 // pred_check_branch
          %83 = sbr.rel (%p81) target = $region20
        $region19: #{tpu_custom_call.1} parent=15 // pred_region
          %s84 = sand.u32 %s20, 1
          %s85 = scalar_lea.sflag [#allocation3], %s84
          %s86 = sand.u32 %s20, 1
          %s87 = smul.addr %s86, 32
          %s88 = scalar_lea.vmem [#allocation2], %s87
          %s89 = smul.u32 2, %s10
          %s91 = ssub.s32 512, 512
          %92 = vsyncadd %s85, %s91
          %s93 = smul.addr %s89, 2
          %s94 = smul.addr %s93, 128
          %s95 = scalar_lea.hbm %s0, %s94
          %s96 = sshll.u32 %s88, 4
          %s97 = int_to_ptr.vmem [resolvable:$true] %s96
          %102 = dma.hbm_to_vmem [thread:$0]  %s95, 512, %s97, %s85, 128, 128, 8
        $region20: #{tpu_custom_call.1} parent=15 // pred_fallthru
          _
      $region16: #{tpu_custom_call.1} parent=5 // pred_fallthru
        _
      %p103 = scmp.le.s32.totalorder 1, %s10
      %p104 = scmp.lt.s32.totalorder %s10, 5
      %p105 = pnand %p103, %p104
      %p106 = pneg %p105
      // Predicated region
      $region21: #{tpu_custom_call.1} parent=5 // pred_check
        _
      $region22: #{tpu_custom_call.1} parent=5 // pred_check_branch
        %108 = sbr.rel (%p105) target = $region24
      $region23: #{tpu_custom_call.1} parent=5 // pred_region
        %s109 = ssub.s32 %s10, 1
        %s110 = sand.u32 %s23, 1
        %s111 = scalar_lea.sflag [#allocation3], %s110
        %s112 = sand.u32 %s23, 1
        %s113 = smul.addr %s112, 32
        %s114 = scalar_lea.vmem [#allocation2], %s113
        // Predicated region
        $region25: #{tpu_custom_call.1} parent=23 // pred_check
          %p115 = pneg %p36
        $region26: #{tpu_custom_call.1} parent=23 // pred_check_branch
          %117 = sbr.rel (%p115) target = $region28
        $region27: #{tpu_custom_call.1} parent=23 // pred_region
          %118 = dma.done %s111, 512
        $region28: #{tpu_custom_call.1} parent=23 // pred_fallthru
          _
        %s119 = sand.u32 %s23, 1
        %s120 = scalar_lea.sflag [#allocation3], %s119
        %s121 = sand.u32 %s23, 1
        %s122 = smul.addr %s121, 32
        %s123 = scalar_lea.vmem [#allocation2], %s122
        %p124 = pneg %p36
        %p125 = pneg %p33
        %p126 = pneg %p62
        %p127 = pneg %p59
        %s128 = smul.u32 2, %s15
        %p129 = scmp.lt.s32.totalorder %s128, 7
        %s130 = scalar_select %p129, %s128, 7
        %s131 = smul.addr %s130, 2
        %s132 = smul.addr %s131, 8
        %s133 = scalar_lea.vmem %s1, %s132
        %s134 = smul.u32 2, %s15
        %s135 = smul.u32 2, %s15
        %p136 = scmp.lt.s32.totalorder %s135, 7
        %s137 = scalar_select %p136, %s135, 7
        %s138 = smul.addr %s137, 2
        %s139 = smul.addr %s138, 8
        %s140 = scalar_lea.vmem %s1, %s139
        %s141 = smul.u32 2, %s15
        %v142 = vld [vmem:[%s114] sm:$0xff]
        %v143 = vld [vmem:[%s114 + $0x8] sm:$0xff]
        %v144 = vld [vmem:[%s114 + $0x10] sm:$0xff]
        %v145 = vld [vmem:[%s114 + $0x18] sm:$0xff]
        %150 = vrot.lane.b32.xlu0 %v142, 127
        %v151 = vpop.permute.xlu0 %150
        %152 = vrot.lane.b32.xlu0 %v143, 127
        %v153 = vpop.permute.xlu0 %152
        %154 = vrot.lane.b32.xlu0 %v144, 127
        %v155 = vpop.permute.xlu0 %154
        %156 = vrot.lane.b32.xlu0 %v145, 127
        %v157 = vpop.permute.xlu0 %156
        %v162 = vmax.f32 %v142, %v151
        %v163 = vmax.f32 %v143, %v153
        %v164 = vmax.f32 %v144, %v155
        %v165 = vmax.f32 %v145, %v157
        %166 = vrot.lane.b32.xlu0 %v142, 126
        %v167 = vpop.permute.xlu0 %166
        %168 = vrot.lane.b32.xlu0 %v143, 126
        %v169 = vpop.permute.xlu0 %168
        %170 = vrot.lane.b32.xlu0 %v144, 126
        %v171 = vpop.permute.xlu0 %170
        %172 = vrot.lane.b32.xlu0 %v145, 126
        %v173 = vpop.permute.xlu0 %172
        %v178 = vmax.f32 %v162, %v167
        %v179 = vmax.f32 %v163, %v169
        %v180 = vmax.f32 %v164, %v171
        %v181 = vmax.f32 %v165, %v173
        %vm186 = vcmask 1046528
        %v187 = vrot.slane %v178, 1
        %v188 = vrot.slane %v179, 1
        %v189 = vsel %vm186, %v187, %v188
        %v190 = vrot.slane %v180, 1
        %v191 = vrot.slane %v181, 1
        %v192 = vsel %vm186, %v190, %v191
        %v197 = vmax.f32 %v178, %v189
        %v198 = vmax.f32 %v179, %v188
        %v199 = vmax.f32 %v180, %v192
        %v200 = vmax.f32 %v181, %v191
        %vm201 = vcmask 1045504
        %v202 = vrot.slane %v178, 2
        %v203 = vrot.slane %v179, 2
        %v204 = vsel %vm201, %v202, %v203
        %v205 = vrot.slane %v180, 2
        %v206 = vrot.slane %v181, 2
        %v207 = vsel %vm201, %v205, %v206
        %v212 = vmax.f32 %v197, %v204
        %v213 = vmax.f32 %v198, %v203
        %v214 = vmax.f32 %v199, %v207
        %v215 = vmax.f32 %v200, %v206
        %vm216 = vcmask 113664
        %217 = vst.msk [vmem:[%s140] sm:$0xff] %vm216, %v212
        %vm218 = vcmask 111616
        %219 = vst.msk [vmem:[%s140 + $0x8] sm:$0x3f] %vm218, %v213
        %220 = vst.msk [vmem:[%s140 + $0x10] sm:$0xff] %vm216, %v214
        %221 = vst.msk [vmem:[%s140 + $0x18] sm:$0x3f] %vm218, %v215
        %s222 = smul.u32 2, %s15
        %p223 = scmp.lt.s32.totalorder %s222, 7
        %s224 = scalar_select %p223, %s222, 7
        %s225 = smul.addr %s224, 2
        %s226 = smul.addr %s225, 8
        %s227 = scalar_lea.vmem %s1, %s226
        // Predicated region
        $region29: #{tpu_custom_call.1} parent=23 // pred_check
          %p228 = pneg %p59
        $region30: #{tpu_custom_call.1} parent=23 // pred_check_branch
          %230 = sbr.rel (%p228) target = $region32
        $region31: #{tpu_custom_call.1} parent=23 // pred_region
          %s231 = smul.u32 2, %s15
        $region32: #{tpu_custom_call.1} parent=23 // pred_fallthru
          _
      $region24: #{tpu_custom_call.1} parent=5 // pred_fallthru
        _
      %p232 = scmp.le.s32.totalorder 2, %s10
      // Predicated region
      $region33: #{tpu_custom_call.1} parent=5 // pred_check
        %p233 = pneg %p232
      $region34: #{tpu_custom_call.1} parent=5 // pred_check_branch
        %235 = sbr.rel (%p233) target = $region36
      $region35: #{tpu_custom_call.1} parent=5 // pred_region
        %s236 = ssub.s32 %s10, 2
        // Predicated region
        $region37: #{tpu_custom_call.1} parent=35 // pred_check
          %p237 = pneg %p65
        $region38: #{tpu_custom_call.1} parent=35 // pred_check_branch
          %239 = sbr.rel (%p237) target = $region40
        $region39: #{tpu_custom_call.1} parent=35 // pred_region
          %s240 = smul.u32 2, %s16
          %p241 = scmp.lt.s32.totalorder %s240, 7
          %s242 = scalar_select %p241, %s240, 7
          %s243 = smul.addr %s242, 2
          %s244 = smul.addr %s243, 8
          %s245 = scalar_lea.vmem %s1, %s244
        $region40: #{tpu_custom_call.1} parent=35 // pred_fallthru
          _
      $region36: #{tpu_custom_call.1} parent=5 // pred_fallthru
        _
    $region6: #{tpu_custom_call.1} parent=1 // loop_footer
      %s14 = sadd.s32 1, %s10
    $region7: #{tpu_custom_call.1} parent=1 // loop_footer_branch
      %9 = sbr.rel target = $region3
    $region8: #{tpu_custom_call.1} parent=1 // loop_exit
      _
    %246 = vsyncpa [#allocation3], 1
    %s247 = scalar_lea.sflag [#allocation3], 1
    %248 = vsyncpa %s247, 1

</llo_original>
